<compile_context>
chip_gen: v6e
topology: v6e:2x2x1
jax: 0.10.0
libtpu: 0.0.40
codegen_flags: <defaults>
</compile_context>

<pallas_src>
import functools

import jax
import jax.numpy as jnp
from jax.experimental import pallas as pl
from jax.experimental.pallas import tpu as pltpu


def _patch_embed_kernel(x_ref, w_ref, b_ref, o_ref):
    # x_ref: (tm, K)   flattened patches for this (batch, patch-tile)
    # w_ref: (K, tn)   flattened conv weight slab
    # b_ref: (1, tn)   bias slab (broadcast over patches)
    # o_ref: (tm, tn)  output tokens
    o_ref[...] = (
        jnp.dot(x_ref[...], w_ref[...], preferred_element_type=jnp.float32)
        + b_ref[...]
    ).astype(o_ref.dtype)


def _pick_tile(extent, candidates):
    for t in candidates:
        if t <= extent and extent % t == 0:
            return t
    return extent  # full extent is always a legal block size


@functools.partial(jax.jit, static_argnames=("patch_size",))
def linear_embedding(x, weight, bias, patch_size):
    """
    x          : (N, C, H, W) float32
    weight     : (dim, C, ph, pw) float32  (PyTorch Conv2d layout)
    bias       : (dim,) float32
    patch_size : (ph, pw), must evenly divide (H, W)
    returns    : (N, (H//ph)*(W//pw), dim) float32 token sequence
    """
    n, c, h, w = x.shape
    ph, pw = patch_size
    assert h % ph == 0 and w % pw == 0, "patch_size must divide spatial dims"
    dim = weight.shape[0]
    assert weight.shape == (dim, c, ph, pw)

    hp, wp = h // ph, w // pw
    num_patches = hp * wp
    k = c * ph * pw

    # --- im2col: (N, C, H, W) -> (N, P, K) with K ordered as (c, u, v), matching
    # PyTorch's conv weight flattening order. Pure layout plumbing (outside kernel).
    xp = x.reshape(n, c, hp, ph, wp, pw)
    xp = xp.transpose(0, 2, 4, 1, 3, 5)          # (N, Hp, Wp, C, ph, pw)
    xp = xp.reshape(n, num_patches, k)

    wr = weight.reshape(dim, k).T                # (K, dim)
    b2 = bias.reshape(1, dim)                    # 2D for clean VMEM layout / broadcast

    # Tile sizes: biggest aligned tiles that evenly divide; fall back to full extent.
    tm = _pick_tile(num_patches, (512, 256, 128, 64, 32, 16, 8))
    tn = _pick_tile(dim, (512, 256, 128))

    grid = (n, num_patches // tm, dim // tn)

    return pl.pallas_call(
        _patch_embed_kernel,
        out_shape=jax.ShapeDtypeStruct((n, num_patches, dim), jnp.float32),
        grid=grid,
        in_specs=[
            # patches: one (tm, K) slab per (batch, patch-tile); batch dim squeezed
            pl.BlockSpec((None, tm, k), lambda b, i, j: (b, i, 0)),
            # weight: (K, tn) slab per dim-tile (reused across batch / patch tiles)
            pl.BlockSpec((k, tn), lambda b, i, j: (0, j)),
            # bias: (1, tn) slab per dim-tile
            pl.BlockSpec((1, tn), lambda b, i, j: (0, j)),
        ],
        out_specs=pl.BlockSpec((None, tm, tn), lambda b, i, j: (b, i, j)),
        compiler_params=pltpu.CompilerParams(
            dimension_semantics=("parallel", "parallel", "parallel")
        ),
    )(xp, wr, b2)


if __name__ == "__main__":
    key = jax.random.PRNGKey(0)
    kx, kw, kb = jax.random.split(key, 3)

    # Small demo shapes: batch=2, channels=4, spatial=16x16, patch=4x4 -> 16 tokens.
    # dim=128 keeps the output lane-dense (multiple of 128), per the perf feedback.
    N, C, H, W = 2, 4, 16, 16
    PATCH = (4, 4)
    DIM = 128

    x = jax.random.uniform(kx, (N, C, H, W), dtype=jnp.float32)
    weight = jax.random.normal(kw, (DIM, C, PATCH[0], PATCH[1]), dtype=jnp.float32) * 0.02
    bias = jax.random.normal(kb, (DIM,), dtype=jnp.float32) * 0.02

    # Round inputs/weights to bf16-representable values so the MXU (bf16 multiply,
    # f32 accumulate) path and the XLA reference conv agree to f32 rounding.
    x = x.astype(jnp.bfloat16).astype(jnp.float32)
    weight = weight.astype(jnp.bfloat16).astype(jnp.float32)

    out = linear_embedding(x, weight, bias, PATCH)
    out = jax.block_until_ready(out)

    # Pure-JAX reference: strided conv -> flatten -> transpose.
    ref = jax.lax.conv_general_dilated(
        x, weight, window_strides=PATCH, padding="VALID",
        dimension_numbers=("NCHW", "OIHW", "NCHW"),
    ) + bias[None, :, None, None]                       # (N, DIM, Hp, Wp)
    hp, wp = H // PATCH[0], W // PATCH[1]
    ref = ref.reshape(N, DIM, hp * wp).transpose(0, 2, 1)  # (N, P, DIM)

    assert out.shape == (N, hp * wp, DIM)
    assert out.dtype == jnp.float32
    assert jnp.allclose(out, ref, atol=1e-4, rtol=1e-4), (
        float(jnp.max(jnp.abs(out - ref)))
    )

    print("KERNEL_OK")
</pallas_src>

<mosaic_0001>
module attributes {stable_mosaic.version = 11 : i64} {
  func.func @_patch_embed_kernel(%arg0: i32, %arg1: i32, %arg2: i32, %arg3: memref<1x16x64xf32, #tpu.memory_space<vmem>>, %arg4: memref<64x128xf32, #tpu.memory_space<vmem>>, %arg5: memref<1x128xf32, #tpu.memory_space<vmem>>, %arg6: memref<1x16x128xf32, #tpu.memory_space<vmem>>) attributes {dimension_semantics = [#tpu.dimension_semantics<parallel>, #tpu.dimension_semantics<parallel>, #tpu.dimension_semantics<parallel>], iteration_bounds = array<i64: 2, 1, 1>, scalar_prefetch = 0 : i64, scratch_operands = 0 : i64, tpu.core_type = #tpu.core_type<tc>, window_params = [{transform_indices = @transform_0, window_bounds = array<i64: 1, 16, 64>}, {transform_indices = @transform_1, window_bounds = array<i64: 64, 128>}, {transform_indices = @transform_2, window_bounds = array<i64: 1, 128>}, {transform_indices = @transform_3, window_bounds = array<i64: 1, 16, 128>}]} {
    %c0 = arith.constant 0 : index
    %c0_0 = arith.constant 0 : index
    %c0_1 = arith.constant 0 : index
    %0 = vector.load %arg3[%c0, %c0_0, %c0_1] : memref<1x16x64xf32, #tpu.memory_space<vmem>>, vector<1x16x64xf32>
    %1 = vector.shape_cast %0 : vector<1x16x64xf32> to vector<16x64xf32>
    %c0_2 = arith.constant 0 : index
    %c0_3 = arith.constant 0 : index
    %2 = vector.load %arg4[%c0_2, %c0_3] : memref<64x128xf32, #tpu.memory_space<vmem>>, vector<64x128xf32>
    %cst = arith.constant dense<0.000000e+00> : vector<16x128xf32>
    %3 = tpu.matmul %1, %2, %cst {dimension_numbers = #tpu.dot_dimension_numbers<[1], [0], [0], [1], [0, 0, 1, 1], [], []>} : vector<16x64xf32>, vector<64x128xf32>, vector<16x128xf32> -> vector<16x128xf32>
    %c0_4 = arith.constant 0 : index
    %c0_5 = arith.constant 0 : index
    %4 = vector.load %arg5[%c0_4, %c0_5] : memref<1x128xf32, #tpu.memory_space<vmem>>, vector<1x128xf32>
    %5 = vector.broadcast %4 : vector<1x128xf32> to vector<16x128xf32>
    %6 = arith.addf %3, %5 : vector<16x128xf32>
    %c0_6 = arith.constant 0 : index
    %c0_7 = arith.constant 0 : index
    %c0_8 = arith.constant 0 : index
    %7 = vector.load %arg6[%c0_6, %c0_7, %c0_8] : memref<1x16x128xf32, #tpu.memory_space<vmem>>, vector<1x16x128xf32>
    %8 = vector.shape_cast %7 : vector<1x16x128xf32> to vector<16x128xf32>
    %9 = vector.shape_cast %6 : vector<16x128xf32> to vector<1x16x128xf32>
    tpu.vector_store %arg6[%c0_6, %c0_7, %c0_8], %9 {strides = array<i32>} : memref<1x16x128xf32, #tpu.memory_space<vmem>>, vector<1x16x128xf32>,
    return
  }
  func.func @transform_0(%arg0: i32, %arg1: i32, %arg2: i32) -> (i32, i32, i32) {
    %c0_i32 = arith.constant 0 : i32
    %c0_i32_0 = arith.constant 0 : i32
    return %arg0, %arg1, %c0_i32 : i32, i32, i32
  }
  func.func @transform_1(%arg0: i32, %arg1: i32, %arg2: i32) -> (i32, i32) {
    %c0_i32 = arith.constant 0 : i32
    %c0_i32_0 = arith.constant 0 : i32
    return %c0_i32, %arg2 : i32, i32
  }
  func.func @transform_2(%arg0: i32, %arg1: i32, %arg2: i32) -> (i32, i32) {
    %c0_i32 = arith.constant 0 : i32
    %c0_i32_0 = arith.constant 0 : i32
    return %c0_i32, %arg2 : i32, i32
  }
  func.func @transform_3(%arg0: i32, %arg1: i32, %arg2: i32) -> (i32, i32, i32) {
    %c0_i32 = arith.constant 0 : i32
    return %arg0, %arg1, %arg2 : i32, i32, i32
  }
}

</mosaic_0001>

<llo_original>
// kernel: linear_embedding.1
$region0: #{linear_embedding.1}
  #allocation0 [shape = 'u32[]', space=smem, size = 0x4, offset = 0x4, fixed_abs, tag = 'smem constant byte address 0x4 - core index']
  #allocation1 [shape = 'u32[144,128]{1,0:T(1,128)}', space=vmem, size = 0x12000, scoped, tag = 'internal scratch']
  %s0 = inlined_call_operand.vmem [shape: f32[2,16,64], index: 0, kind: input, shape index: {}]
  %s1 = inlined_call_operand.vmem [shape: f32[64,128], index: 1, kind: input, shape index: {}]
  %s2 = inlined_call_operand.vmem [shape: f32[1,128], index: 2, kind: input, shape index: {}]
  %s3 = inlined_call_operand.hbm [shape: f32[2,16,128], index: 3, kind: output, shape index: {}]
  %s4 = sld [smem:[#allocation0]]
  $region45: #{linear_embedding.1} parent=0
    _
  %s6 = ssub.s32 1, %s4
  %s7 = scalar_select 0, %s6, %s4
  $region1: #{linear_embedding.1} parent=0
    #allocation2 [shape = 'u8[16384]{0}', space=vmem, size = 0x4000, scoped, tag = 'output window, operand 0']
    #allocation3 [shape = 's32[2]{0}', space=sflag, size = 0x8, scoped, tag = 'scoped memory for linear_embedding.1']
    %8 = vsyncpa [#allocation3], 0
    %s9 = scalar_lea.sflag [#allocation3], 1
    %10 = vsyncpa %s9, 0
    loop: start=0, step=1, limit=4
    $region2: #{linear_embedding.1} parent=1 // loop_pre_header
      _
    $region3: #{linear_embedding.1} parent=1 // loop_header
      %s12 = sphi 0, %s16
      %p13 = scmp.ge.s32.totalorder %s12, 4
      %s19 = sphi 0, %s38
      %s20 = sphi 0, %s34
      %s21 = sphi 0, %s30
      %s22 = sphi 0, %s19
      %s23 = sphi 0, %s20
      %s24 = sphi 0, %s21
      %s25 = sphi 0, %s22
      %s26 = sphi 0, %s23
      %s27 = sphi 0, %s24
      %s43 = sphi 0, %s45
      %s46 = sphi 0, %s43
      %s47 = sphi 0, %s46
      %s63 = sphi 0, %s47
      %s69 = sphi 0, %s71
      %s72 = sphi 0, %s69
      %s73 = sphi 0, %s72
      %s89 = sphi 0, %s73
      %s95 = sphi 0, %s97
      %s98 = sphi 0, %s95
      %s99 = sphi 0, %s98
      %s115 = sphi 0, %s99
      %s125 = sphi 0, %s127
      %s128 = sphi 0, %s125
      %s129 = sphi 0, %s128
      %s145 = sphi 0, %s129
    $region4: #{linear_embedding.1} parent=1 // loop_header_branch
      %15 = sbr.rel (%p13) target = $region8
    $region5: #{linear_embedding.1} parent=1 // loop_body
      %s17 = ssub.s32 %s12, 1
      %s18 = ssub.s32 %s12, 2
      %s28 = sadd.s32 1, %s21
      %p29 = scmp.ge.s32.totalorder %s28, 1
      %s30 = scalar_select %p29, 0, %s28
      %s31 = sadd.s32 1, %s20
      %s32 = scalar_select %p29, %s31, %s20
      %p33 = scmp.ge.s32.totalorder %s32, 1
      %s34 = scalar_select %p33, 0, %s32
      %s35 = sadd.s32 1, %s19
      %s36 = scalar_select %p33, %s35, %s19
      %p37 = scmp.ge.s32.totalorder %s36, 2
      %s38 = scalar_select %p37, 0, %s36
      %s39 = ssub.s32 %s19, %s38
      %s40 = ssub.s32 %s20, %s34
      %s41 = sor.u32 %s39, %s40
      %p42 = scmp.eq.s32.totalorder %s41, 0
      %s44 = sadd.s32 %s43, 1
      %s45 = scalar_select %p42, %s43, %s44
      %p48 = pneg %p42
      %p49 = scmp.eq.s32.totalorder %s12, 1
      %p50 = por %p48, %p49
      %p51 = scmp.ne.s32.totalorder %s43, %s46
      %p52 = scmp.eq.s32.totalorder %s12, 0
      %p53 = por %p51, %p52
      %p54 = scmp.ne.s32.totalorder %s43, %s46
      %p55 = scmp.eq.s32.totalorder %s17, 1
      %p56 = por %p54, %p55
      %p57 = scmp.ne.s32.totalorder %s46, %s47
      %p58 = scmp.eq.s32.totalorder %s17, 0
      %p59 = por %p57, %p58
      %p60 = scmp.ne.s32.totalorder %s46, %s47
      %p61 = scmp.eq.s32.totalorder %s18, 1
      %p62 = por %p60, %p61
      %p64 = scmp.ne.s32.totalorder %s47, %s63
      %p65 = scmp.eq.s32.totalorder %s18, 0
      %p66 = por %p64, %p65
      %s67 = ssub.s32 %s21, %s30
      %p68 = scmp.eq.s32.totalorder %s67, 0
      %s70 = sadd.s32 %s69, 1
      %s71 = scalar_select %p68, %s69, %s70
      %p74 = pneg %p68
      %p75 = scmp.eq.s32.totalorder %s12, 1
      %p76 = por %p74, %p75
      %p77 = scmp.ne.s32.totalorder %s69, %s72
      %p78 = scmp.eq.s32.totalorder %s12, 0
      %p79 = por %p77, %p78
      %p80 = scmp.ne.s32.totalorder %s69, %s72
      %p81 = scmp.eq.s32.totalorder %s17, 1
      %p82 = por %p80, %p81
      %p83 = scmp.ne.s32.totalorder %s72, %s73
      %p84 = scmp.eq.s32.totalorder %s17, 0
      %p85 = por %p83, %p84
      %p86 = scmp.ne.s32.totalorder %s72, %s73
      %p87 = scmp.eq.s32.totalorder %s18, 1
      %p88 = por %p86, %p87
      %p90 = scmp.ne.s32.totalorder %s73, %s89
      %p91 = scmp.eq.s32.totalorder %s18, 0
      %p92 = por %p90, %p91
      %s93 = ssub.s32 %s21, %s30
      %p94 = scmp.eq.s32.totalorder %s93, 0
      %s96 = sadd.s32 %s95, 1
      %s97 = scalar_select %p94, %s95, %s96
      %p100 = pneg %p94
      %p101 = scmp.eq.s32.totalorder %s12, 1
      %p102 = por %p100, %p101
      %p103 = scmp.ne.s32.totalorder %s95, %s98
      %p104 = scmp.eq.s32.totalorder %s12, 0
      %p105 = por %p103, %p104
      %p106 = scmp.ne.s32.totalorder %s95, %s98
      %p107 = scmp.eq.s32.totalorder %s17, 1
      %p108 = por %p106, %p107
      %p109 = scmp.ne.s32.totalorder %s98, %s99
      %p110 = scmp.eq.s32.totalorder %s17, 0
      %p111 = por %p109, %p110
      %p112 = scmp.ne.s32.totalorder %s98, %s99
      %p113 = scmp.eq.s32.totalorder %s18, 1
      %p114 = por %p112, %p113
      %p116 = scmp.ne.s32.totalorder %s99, %s115
      %p117 = scmp.eq.s32.totalorder %s18, 0
      %p118 = por %p116, %p117
      %s119 = ssub.s32 %s19, %s38
      %s120 = ssub.s32 %s20, %s34
      %s121 = sor.u32 %s119, %s120
      %s122 = ssub.s32 %s21, %s30
      %s123 = sor.u32 %s121, %s122
      %p124 = scmp.eq.s32.totalorder %s123, 0
      %s126 = sadd.s32 %s125, 1
      %s127 = scalar_select %p124, %s125, %s126
      %p130 = pneg %p124
      %p131 = scmp.eq.s32.totalorder %s12, 1
      %p132 = por %p130, %p131
      %p133 = scmp.ne.s32.totalorder %s125, %s128
      %p134 = scmp.eq.s32.totalorder %s12, 0
      %p135 = por %p133, %p134
      %p136 = scmp.ne.s32.totalorder %s125, %s128
      %p137 = scmp.eq.s32.totalorder %s17, 1
      %p138 = por %p136, %p137
      %p139 = scmp.ne.s32.totalorder %s128, %s129
      %p140 = scmp.eq.s32.totalorder %s17, 0
      %p141 = por %p139, %p140
      %p142 = scmp.ne.s32.totalorder %s128, %s129
      %p143 = scmp.eq.s32.totalorder %s18, 1
      %p144 = por %p142, %p143
      %p146 = scmp.ne.s32.totalorder %s129, %s145
      %p147 = scmp.eq.s32.totalorder %s18, 0
      %p148 = por %p146, %p147
      %p149 = scmp.le.s32.totalorder 1, %s12
      %p150 = scmp.lt.s32.totalorder %s12, 3
      %p151 = pnand %p149, %p150
      %p152 = pneg %p151
      // Predicated region
      $region9: #{linear_embedding.1} parent=5 // pred_check
        _
      $region10: #{linear_embedding.1} parent=5 // pred_check_branch
        %154 = sbr.rel (%p151) target = $region12
      $region11: #{linear_embedding.1} parent=5 // pred_region
        %s155 = ssub.s32 %s12, 1
        // Predicated region
        $region13: #{linear_embedding.1} parent=11 // pred_check
          %p156 = pneg %p85
        $region14: #{linear_embedding.1} parent=11 // pred_check_branch
          %158 = sbr.rel (%p156) target = $region16
        $region15: #{linear_embedding.1} parent=11 // pred_region
          %p159 = scmp.lt.s32.totalorder %s24, 0
          %s160 = scalar_select %p159, %s24, 0
          %s161 = smul.addr %s160, 8
          %s162 = scalar_lea.vmem %s1, %s161
        $region16: #{linear_embedding.1} parent=11 // pred_fallthru
          _
        // Predicated region
        $region17: #{linear_embedding.1} parent=11 // pred_check
          %p163 = pneg %p111
        $region18: #{linear_embedding.1} parent=11 // pred_check_branch
          %165 = sbr.rel (%p163) target = $region20
        $region19: #{linear_embedding.1} parent=11 // pred_region
          %p166 = scmp.lt.s32.totalorder %s24, 0
          %s167 = scalar_select %p166, %s24, 0
          %s168 = scalar_lea.vmem %s2, %s167
        $region20: #{linear_embedding.1} parent=11 // pred_fallthru
          _
      $region12: #{linear_embedding.1} parent=5 // pred_fallthru
        _
      %p169 = scmp.lt.s32.totalorder %s12, 2
      // Predicated region
      $region21: #{linear_embedding.1} parent=5 // pred_check
        %p170 = pneg %p169
      $region22: #{linear_embedding.1} parent=5 // pred_check_branch
        %172 = sbr.rel (%p170) target = $region24
      $region23: #{linear_embedding.1} parent=5 // pred_region
        // Predicated region
        $region25: #{linear_embedding.1} parent=23 // pred_check
          %p173 = pneg %p53
        $region26: #{linear_embedding.1} parent=23 // pred_check_branch
          %175 = sbr.rel (%p173) target = $region28
        $region27: #{linear_embedding.1} parent=23 // pred_region
          %s176 = smul.u32 2, %s20
          %p177 = scmp.lt.s32.totalorder %s19, 1
          %s178 = scalar_select %p177, %s19, 1
          %p179 = scmp.lt.s32.totalorder %s176, 1
          %s180 = scalar_select %p179, %s176, 1
          %s181 = smul.addr %s178, 2
          %s182 = sadd.s32 %s180, %s181
          %s183 = smul.addr %s182, 8
          %s184 = scalar_lea.vmem %s0, %s183
          %s185 = smul.u32 2, %s20
        $region28: #{linear_embedding.1} parent=23 // pred_fallthru
          _
      $region24: #{linear_embedding.1} parent=5 // pred_fallthru
        _
      %p186 = scmp.le.s32.totalorder 1, %s12
      %p187 = scmp.lt.s32.totalorder %s12, 3
      %p188 = pnand %p186, %p187
      %p189 = pneg %p188
      // Predicated region
      $region29: #{linear_embedding.1} parent=5 // pred_check
        _
      $region30: #{linear_embedding.1} parent=5 // pred_check_branch
        %191 = sbr.rel (%p188) target = $region32
      $region31: #{linear_embedding.1} parent=5 // pred_region
        %s192 = ssub.s32 %s12, 1
        %s193 = smul.u32 2, %s23
        %p194 = scmp.lt.s32.totalorder %s22, 1
        %s195 = scalar_select %p194, %s22, 1
        %p196 = scmp.lt.s32.totalorder %s193, 1
        %s197 = scalar_select %p196, %s193, 1
        %s198 = smul.addr %s195, 2
        %s199 = sadd.s32 %s197, %s198
        %s200 = smul.addr %s199, 8
        %s201 = scalar_lea.vmem %s0, %s200
        %p202 = pneg %p59
        %p203 = pneg %p56
        %p204 = scmp.lt.s32.totalorder %s24, 0
        %s205 = scalar_select %p204, %s24, 0
        %s206 = smul.addr %s205, 8
        %s207 = scalar_lea.vmem %s1, %s206
        %p208 = pneg %p85
        %p209 = pneg %p82
        %p210 = scmp.lt.s32.totalorder %s24, 0
        %s211 = scalar_select %p210, %s24, 0
        %s212 = scalar_lea.vmem %s2, %s211
        %p213 = pneg %p111
        %p214 = pneg %p108
        %p215 = pneg %p141
        %p216 = pneg %p138
        %s217 = sand.u32 %s128, 1
        %s218 = scalar_lea.sflag [#allocation3], %s217
        %s219 = sand.u32 %s128, 1
        %s220 = smul.addr %s219, 16
        %s221 = scalar_lea.vmem [#allocation2], %s220
        %s222 = smul.u32 2, %s23
        %p223 = scmp.lt.s32.totalorder %s22, 1
        %s224 = scalar_select %p223, %s22, 1
        %p225 = scmp.lt.s32.totalorder %s222, 1
        %s226 = scalar_select %p225, %s222, 1
        %s227 = smul.addr %s224, 2
        %s228 = sadd.s32 %s226, %s227
        %s229 = smul.addr %s228, 8
        %s230 = scalar_lea.vmem %s0, %s229
        %s231 = smul.u32 2, %s23
        %p232 = scmp.lt.s32.totalorder %s24, 0
        %s233 = scalar_select %p232, %s24, 0
        %s234 = smul.addr %s233, 8
        %s235 = scalar_lea.vmem %s1, %s234
        %p236 = scmp.lt.s32.totalorder %s24, 0
        %s237 = scalar_select %p236, %s24, 0
        %s238 = scalar_lea.vmem %s2, %s237
        %s239 = smul.u32 2, %s23
        %v240 = vld [vmem:[%s230] sm:$0xff]
        %v241 = vld [vmem:[%s230 + $0x8] sm:$0xff]
        %v242 = vld [vmem:[%s235] sm:$0xff]
        %v243 = vld [vmem:[%s235 + $0x8] sm:$0xff]
        %v244 = vld [vmem:[%s235 + $0x10] sm:$0xff]
        %v245 = vld [vmem:[%s235 + $0x18] sm:$0xff]
        %v246 = vld [vmem:[%s235 + $0x20] sm:$0xff]
        %v247 = vld [vmem:[%s235 + $0x28] sm:$0xff]
        %v248 = vld [vmem:[%s235 + $0x30] sm:$0xff]
        %v249 = vld [vmem:[%s235 + $0x38] sm:$0xff]
        %v250 = vld [vmem:[%s238] sm:$0x1]
        %v252 = vlaneseq
        %v253 = vshrl.u32 %v252, 7
        %v254 = vsub.s32 0, %v253
        %v255 = vrot.slane %v250, %v254
        %vm257 = vcmask 523264
        %v259 = vsel %vm257, %v240, 0
        %v262 = vsel %vm257, %v241, 0
        %264 = vmatprep.subr.mxu0 0.0
        %265 = vmatpush1.msra.mxu0 0.0
        %266 = vmatprep.subr.mxu0 0.0
        %267 = vmatpush1.msra.mxu0 0.0
        %268 = vmatprep.subr.mxu0 0.0
        %269 = vmatpush1.msra.mxu0 0.0
        %270 = vmatprep.subr.mxu0 0.0
        %271 = vmatpush1.msra.mxu0 0.0
        %272 = vmatprep.subr.mxu0 0.0
        %273 = vmatpush1.msra.mxu0 0.0
        %274 = vmatprep.subr.mxu0 0.0
        %275 = vmatpush1.msra.mxu0 0.0
        %276 = vmatprep.subr.mxu0 0.0
        %277 = vmatpush1.msra.mxu0 0.0
        %278 = vmatprep.subr.mxu0 0.0
        %279 = vmatpush1.msra.mxu0 0.0
        %280 = vmatprep.subr.mxu0 0.0
        %281 = vmatpush1.msra.mxu0 %v249
        %282 = vmatprep.subr.mxu0 0.0
        %283 = vmatpush1.msra.mxu0 %v248
        %284 = vmatprep.subr.mxu0 0.0
        %285 = vmatpush1.msra.mxu0 %v247
        %286 = vmatprep.subr.mxu0 0.0
        %287 = vmatpush1.msra.mxu0 %v246
        %288 = vmatprep.subr.mxu0 0.0
        %289 = vmatpush1.msra.mxu0 %v245
        %290 = vmatprep.subr.mxu0 0.0
        %291 = vmatpush1.msra.mxu0 %v244
        %292 = vmatprep.subr.mxu0 0.0
        %293 = vmatpush1.msra.mxu0 %v243
        %294 = vmatprep.subr.mxu0 0.0
        %295 = vmatpush1.msra.mxu0 %v242
        %296 = vmatprep.subr.mxu0 0.0
        %297 = vmatpush2.msra.mxu0 0.0
        %298 = vmatprep.subr.mxu0 0.0
        %299 = vmatpush2.msra.mxu0 0.0
        %300 = vmatprep.subr.mxu0 0.0
        %301 = vmatpush2.msra.mxu0 0.0
        %302 = vmatprep.subr.mxu0 0.0
        %303 = vmatpush2.msra.mxu0 0.0
        %304 = vmatprep.subr.mxu0 0.0
        %305 = vmatpush2.msra.mxu0 0.0
        %306 = vmatprep.subr.mxu0 0.0
        %307 = vmatpush2.msra.mxu0 0.0
        %308 = vmatprep.subr.mxu0 0.0
        %309 = vmatpush2.msra.mxu0 0.0
        %310 = vmatprep.subr.mxu0 0.0
        %311 = vmatpush2.msra.mxu0 0.0
        %312 = vmatprep.subr.mxu0 0.0
        %313 = vmatpush2.msra.mxu0 0.0
        %314 = vmatprep.subr.mxu0 0.0
        %315 = vmatpush2.msra.mxu0 0.0
        %316 = vmatprep.subr.mxu0 0.0
        %317 = vmatpush2.msra.mxu0 0.0
        %318 = vmatprep.subr.mxu0 0.0
        %319 = vmatpush2.msra.mxu0 0.0
        %320 = vmatprep.subr.mxu0 0.0
        %321 = vmatpush2.msra.mxu0 0.0
        %322 = vmatprep.subr.mxu0 0.0
        %323 = vmatpush2.msra.mxu0 0.0
        %324 = vmatprep.subr.mxu0 0.0
        %325 = vmatpush2.msra.mxu0 0.0
        %326 = vmatprep.subr.mxu0 0.0
        %327 = vmatpush2.msra.mxu0 0.0
        %328 = vmatprep.mubr.f32.mxu0 0.0
        %329 = vmatmul.mubr.f32.gmra.mxu0 %v259
        %v330 = vpop.f32.mrf.mxu0
        %v331 = vadd.f32 %v255, %v330
        %v332 = vpop.f32.mrf.mxu0
        %333 = vmatprep.mubr.f32.mxu0 0.0
        %334 = vmatmul.mubr.f32.gmra.mxu0 %v262
        %v335 = vpop.f32.mrf.mxu0
        %v336 = vadd.f32 %v255, %v335
        %v337 = vpop.f32.mrf.mxu0
        %338 = vdwg.mxu0
        %339 = vst [vmem:[%s221] sm:$0xff] %v331
        %340 = vst [vmem:[%s221 + $0x8] sm:$0xff] %v336
        %s341 = sand.u32 %s128, 1
        %s342 = scalar_lea.sflag [#allocation3], %s341
        %s343 = sand.u32 %s128, 1
        %s344 = smul.addr %s343, 16
        %s345 = scalar_lea.vmem [#allocation2], %s344
        // Predicated region
        $region33: #{linear_embedding.1} parent=31 // pred_check
          %p346 = pneg %p138
        $region34: #{linear_embedding.1} parent=31 // pred_check_branch
          %348 = sbr.rel (%p346) target = $region36
        $region35: #{linear_embedding.1} parent=31 // pred_region
          %s349 = smul.u32 2, %s23
          %s351 = ssub.s32 256, 256
          %352 = vsyncadd %s342, %s351
          %s353 = sadd.s32 %s24, %s349
          %s354 = smul.addr %s22, 2
          %s355 = sadd.s32 %s353, %s354
          %s356 = smul.addr %s355, 128
          %s357 = scalar_lea.hbm %s3, %s356
          %s358 = sshll.u32 %s345, 4
          %s359 = int_to_ptr.vmem [resolvable:$true] %s358
          %364 = dma.vmem_to_hbm [thread:$0]  %s359, 256, %s357, %s342, 128, 128, 8
        $region36: #{linear_embedding.1} parent=31 // pred_fallthru
          _
      $region32: #{linear_embedding.1} parent=5 // pred_fallthru
        _
      %p365 = scmp.le.s32.totalorder 2, %s12
      // Predicated region
      $region37: #{linear_embedding.1} parent=5 // pred_check
        %p366 = pneg %p365
      $region38: #{linear_embedding.1} parent=5 // pred_check_branch
        %368 = sbr.rel (%p366) target = $region40
      $region39: #{linear_embedding.1} parent=5 // pred_region
        %s369 = ssub.s32 %s12, 2
        // Predicated region
        $region41: #{linear_embedding.1} parent=39 // pred_check
          %p370 = pneg %p144
        $region42: #{linear_embedding.1} parent=39 // pred_check_branch
          %372 = sbr.rel (%p370) target = $region44
        $region43: #{linear_embedding.1} parent=39 // pred_region
          %s373 = sand.u32 %s129, 1
          %s374 = scalar_lea.sflag [#allocation3], %s373
          %s375 = sand.u32 %s129, 1
          %s376 = smul.addr %s375, 16
          %s377 = scalar_lea.vmem [#allocation2], %s376
          %378 = dma.done %s374, 256
        $region44: #{linear_embedding.1} parent=39 // pred_fallthru
          _
      $region40: #{linear_embedding.1} parent=5 // pred_fallthru
        _
    $region6: #{linear_embedding.1} parent=1 // loop_footer
      %s16 = sadd.s32 1, %s12
    $region7: #{linear_embedding.1} parent=1 // loop_footer_branch
      %11 = sbr.rel target = $region3
    $region8: #{linear_embedding.1} parent=1 // loop_exit
      _
    %379 = vsyncpa [#allocation3], 1
    %s380 = scalar_lea.sflag [#allocation3], 1
    %381 = vsyncpa %s380, 1

</llo_original>
